<compile_context>
chip_gen: v7x
topology: tpu7x:2x2x1
jax: 0.10.0
libtpu: 0.0.40
codegen_flags: <defaults>
</compile_context>

<pallas_src>
import jax
import jax.numpy as jnp
from jax.experimental import pallas as pl
from jax.experimental.pallas import tpu as pltpu


def _round_up(n: int, m: int) -> int:
    return ((n + m - 1) // m) * m


def policy_kernel(x_ref, w1_ref, b1_ref, w2_ref, b2_ref, o_ref):
    # Feature-major: batch occupies the lane axis of every vreg.
    x = x_ref[...]                                                        # [S, TB] f32

    # fc1 + ReLU  (f32 MXU matmul; M=H, K=S, N=TB lane-dense)
    h = jnp.dot(w1_ref[...], x, preferred_element_type=jnp.float32) + b1_ref[...]
    h = jnp.maximum(h, 0.0)                                               # [H, TB]

    # fc2
    logits = jnp.dot(w2_ref[...], h, preferred_element_type=jnp.float32) + b2_ref[...]

    # Numerically stable softmax over the action (sublane) axis.
    m = jnp.max(logits, axis=0, keepdims=True)                            # [1, TB]
    e = jnp.exp(logits - m)
    denom = jnp.sum(e, axis=0, keepdims=True)
    inv = pl.reciprocal(denom, approx=True)        # EUP slot (free-ish)
    inv = inv * (2.0 - denom * inv)                # one Newton step -> ~f32 accuracy
    o_ref[...] = e * inv                                                  # [A, TB]


def policy_forward(x, w1, b1, w2, b2, *, block_b=4096):
    """x: [B, state_n]; w1: [hidden, state]; b1: [hidden]; w2: [action, hidden]; b2: [action].
    Returns softmax action probabilities, shape [B, action_n], f32."""
    B, S = x.shape
    H = int(w1.shape[0])
    A = int(w2.shape[0])

    # Batch tiling along the lane axis.  One tile (grid=(1,), no padding) for
    # moderate B; otherwise an even number of lane-aligned tiles (v7x megacore).
    if B <= block_b:
        n_tiles, tb, b_pad = 1, B, B
    else:
        n_tiles = pl.cdiv(B, block_b)
        if n_tiles % 2:
            n_tiles += 1                              # keep both v7x TCs busy
        tb = _round_up(pl.cdiv(B, n_tiles), 128)      # lane-dense tiles
        b_pad = tb * n_tiles

    x_t = jnp.asarray(x, jnp.float32).T               # [S, B] feature-major
    if b_pad != B:
        x_t = jnp.pad(x_t, ((0, 0), (0, b_pad - B)))

    w1 = jnp.asarray(w1, jnp.float32)                 # [H, S]
    w2 = jnp.asarray(w2, jnp.float32)                 # [A, H]
    b1c = jnp.asarray(b1, jnp.float32).reshape(H, 1)  # broadcast over lanes
    b2c = jnp.asarray(b2, jnp.float32).reshape(A, 1)

    out_t = pl.pallas_call(
        policy_kernel,
        out_shape=jax.ShapeDtypeStruct((A, b_pad), jnp.float32),
        grid=(n_tiles,),
        in_specs=[
            pl.BlockSpec((S, tb), lambda i: (0, i)),   # x: streamed, lane-dense
            pl.BlockSpec((H, S), lambda i: (0, 0)),    # params: resident (constant maps)
            pl.BlockSpec((H, 1), lambda i: (0, 0)),
            pl.BlockSpec((A, H), lambda i: (0, 0)),
            pl.BlockSpec((A, 1), lambda i: (0, 0)),
        ],
        out_specs=pl.BlockSpec((A, tb), lambda i: (0, i)),
        compiler_params=pltpu.CompilerParams(
            dimension_semantics=("parallel",)),
    )(x_t, w1, b1c, w2, b2c)

    # Back to the PyTorch convention [B, action_n]; tiny XLA transpose ([A, B]).
    return out_t[:, :B].T


def init_params(key, state_n, action_n, hidden_n):
    """Deterministic PyTorch-style nn.Linear init: U(-1/sqrt(fan_in), 1/sqrt(fan_in)).
    Weights kept in the native PyTorch layout [out_features, in_features]."""
    k1, k2, k3, k4 = jax.random.split(key, 4)
    bound1 = 1.0 / (state_n ** 0.5)
    bound2 = 1.0 / (hidden_n ** 0.5)
    w1 = jax.random.uniform(k1, (hidden_n, state_n), jnp.float32, -bound1, bound1)
    b1 = jax.random.uniform(k2, (hidden_n,), jnp.float32, -bound1, bound1)
    w2 = jax.random.uniform(k3, (action_n, hidden_n), jnp.float32, -bound2, bound2)
    b2 = jax.random.uniform(k4, (action_n,), jnp.float32, -bound2, bound2)
    return w1, b1, w2, b2


if __name__ == "__main__":
    # LunarLander-like dims: state_n=8, action_n=4, hidden_n=32, batch=200.
    # B=200 fits in a single tile -> grid=(1,), no padding, no masked lane stores.
    state_n, action_n, hidden_n, batch = 8, 4, 32, 200

    key = jax.random.PRNGKey(0)
    kx, kp = jax.random.split(key)
    x = jax.random.normal(kx, (batch, state_n), jnp.float32)
    w1, b1, w2, b2 = init_params(kp, state_n, action_n, hidden_n)

    out = policy_forward(x, w1, b1, w2, b2)
    out = jax.block_until_ready(out)

    # Pure-JAX f32 reference with PyTorch semantics.
    hi = jax.lax.Precision.HIGHEST
    h_ref = jnp.maximum(jnp.dot(x, w1.T, precision=hi) + b1, 0.0)
    logits_ref = jnp.dot(h_ref, w2.T, precision=hi) + b2
    probs_ref = jax.nn.softmax(logits_ref, axis=-1)

    assert out.shape == (batch, action_n)
    assert jnp.allclose(out, probs_ref, atol=1e-4), "mismatch vs reference"
    assert jnp.allclose(jnp.sum(out, axis=-1), 1.0, atol=1e-5)

    print("KERNEL_OK")
</pallas_src>

<mosaic_0001>
module attributes {stable_mosaic.version = 11 : i64} {
  func.func @policy_kernel(%arg0: i32, %arg1: memref<8x200xf32, #tpu.memory_space<vmem>>, %arg2: memref<32x8xf32, #tpu.memory_space<vmem>>, %arg3: memref<32x1xf32, #tpu.memory_space<vmem>>, %arg4: memref<4x32xf32, #tpu.memory_space<vmem>>, %arg5: memref<4x1xf32, #tpu.memory_space<vmem>>, %arg6: memref<4x200xf32, #tpu.memory_space<vmem>>) attributes {dimension_semantics = [#tpu.dimension_semantics<parallel>], iteration_bounds = array<i64: 1>, scalar_prefetch = 0 : i64, scratch_operands = 0 : i64, tpu.core_type = #tpu.core_type<tc>, window_params = [{transform_indices = @transform_0, window_bounds = array<i64: 8, 200>}, {pipeline_mode = #tpu.pipeline_mode<synchronous>, transform_indices = @transform_1, window_bounds = array<i64: 32, 8>}, {pipeline_mode = #tpu.pipeline_mode<synchronous>, transform_indices = @transform_2, window_bounds = array<i64: 32, 1>}, {pipeline_mode = #tpu.pipeline_mode<synchronous>, transform_indices = @transform_3, window_bounds = array<i64: 4, 32>}, {pipeline_mode = #tpu.pipeline_mode<synchronous>, transform_indices = @transform_4, window_bounds = array<i64: 4, 1>}, {transform_indices = @transform_5, window_bounds = array<i64: 4, 200>}]} {
    %c0 = arith.constant 0 : index
    %c0_0 = arith.constant 0 : index
    %0 = vector.load %arg1[%c0, %c0_0] : memref<8x200xf32, #tpu.memory_space<vmem>>, vector<8x200xf32>
    %c0_1 = arith.constant 0 : index
    %c0_2 = arith.constant 0 : index
    %1 = vector.load %arg2[%c0_1, %c0_2] : memref<32x8xf32, #tpu.memory_space<vmem>>, vector<32x8xf32>
    %cst = arith.constant dense<0.000000e+00> : vector<32x200xf32>
    %2 = tpu.matmul %1, %0, %cst {dimension_numbers = #tpu.dot_dimension_numbers<[1], [0], [0], [1], [0, 0, 1, 1], [], []>} : vector<32x8xf32>, vector<8x200xf32>, vector<32x200xf32> -> vector<32x200xf32>
    %c0_3 = arith.constant 0 : index
    %c0_4 = arith.constant 0 : index
    %3 = vector.load %arg3[%c0_3, %c0_4] : memref<32x1xf32, #tpu.memory_space<vmem>>, vector<32x1xf32>
    %4 = vector.broadcast %3 : vector<32x1xf32> to vector<32x200xf32>
    %5 = arith.addf %2, %4 : vector<32x200xf32>
    %cst_5 = arith.constant 0.000000e+00 : f32
    %6 = vector.broadcast %cst_5 : f32 to vector<32x200xf32>
    %7 = arith.maximumf %5, %6 : vector<32x200xf32>
    %c0_6 = arith.constant 0 : index
    %c0_7 = arith.constant 0 : index
    %8 = vector.load %arg4[%c0_6, %c0_7] : memref<4x32xf32, #tpu.memory_space<vmem>>, vector<4x32xf32>
    %cst_8 = arith.constant dense<0.000000e+00> : vector<4x200xf32>
    %9 = tpu.matmul %8, %7, %cst_8 {dimension_numbers = #tpu.dot_dimension_numbers<[1], [0], [0], [1], [0, 0, 1, 1], [], []>} : vector<4x32xf32>, vector<32x200xf32>, vector<4x200xf32> -> vector<4x200xf32>
    %c0_9 = arith.constant 0 : index
    %c0_10 = arith.constant 0 : index
    %10 = vector.load %arg5[%c0_9, %c0_10] : memref<4x1xf32, #tpu.memory_space<vmem>>, vector<4x1xf32>
    %11 = vector.broadcast %10 : vector<4x1xf32> to vector<4x200xf32>
    %12 = arith.addf %9, %11 : vector<4x200xf32>
    %cst_11 = arith.constant dense<0xFF800000> : vector<200xf32>
    %13 = vector.multi_reduction <maximumf>, %12, %cst_11 [0] : vector<4x200xf32> to vector<200xf32>
    %14 = vector.shape_cast %13 : vector<200xf32> to vector<1x200xf32>
    %15 = vector.broadcast %14 : vector<1x200xf32> to vector<4x200xf32>
    %16 = arith.subf %12, %15 : vector<4x200xf32>
    %17 = math.exp %16 : vector<4x200xf32>
    %cst_12 = arith.constant dense<0.000000e+00> : vector<200xf32>
    %18 = vector.multi_reduction <add>, %17, %cst_12 [0] : vector<4x200xf32> to vector<200xf32>
    %19 = vector.shape_cast %18 : vector<200xf32> to vector<1x200xf32>
    %20 = tpu.reciprocal %19 {approx = true} : vector<1x200xf32> -> vector<1x200xf32>
    %21 = arith.mulf %19, %20 : vector<1x200xf32>
    %cst_13 = arith.constant 2.000000e+00 : f32
    %22 = vector.broadcast %cst_13 : f32 to vector<1x200xf32>
    %23 = arith.subf %22, %21 : vector<1x200xf32>
    %24 = arith.mulf %20, %23 : vector<1x200xf32>
    %25 = vector.broadcast %24 : vector<1x200xf32> to vector<4x200xf32>
    %26 = arith.mulf %17, %25 : vector<4x200xf32>
    %c0_14 = arith.constant 0 : index
    %c0_15 = arith.constant 0 : index
    %27 = vector.load %arg6[%c0_14, %c0_15] : memref<4x200xf32, #tpu.memory_space<vmem>>, vector<4x200xf32>
    tpu.vector_store %arg6[%c0_14, %c0_15], %26 {strides = array<i32>} : memref<4x200xf32, #tpu.memory_space<vmem>>, vector<4x200xf32>,
    return
  }
  func.func @transform_0(%arg0: i32) -> (i32, i32) {
    %c0_i32 = arith.constant 0 : i32
    %c0_i32_0 = arith.constant 0 : i32
    return %c0_i32, %arg0 : i32, i32
  }
  func.func @transform_1(%arg0: i32) -> (i32, i32) {
    %c0_i32 = arith.constant 0 : i32
    %c0_i32_0 = arith.constant 0 : i32
    %c0_i32_1 = arith.constant 0 : i32
    return %c0_i32, %c0_i32_0 : i32, i32
  }
  func.func @transform_2(%arg0: i32) -> (i32, i32) {
    %c0_i32 = arith.constant 0 : i32
    %c0_i32_0 = arith.constant 0 : i32
    %c0_i32_1 = arith.constant 0 : i32
    return %c0_i32, %c0_i32_0 : i32, i32
  }
  func.func @transform_3(%arg0: i32) -> (i32, i32) {
    %c0_i32 = arith.constant 0 : i32
    %c0_i32_0 = arith.constant 0 : i32
    %c0_i32_1 = arith.constant 0 : i32
    return %c0_i32, %c0_i32_0 : i32, i32
  }
  func.func @transform_4(%arg0: i32) -> (i32, i32) {
    %c0_i32 = arith.constant 0 : i32
    %c0_i32_0 = arith.constant 0 : i32
    %c0_i32_1 = arith.constant 0 : i32
    return %c0_i32, %c0_i32_0 : i32, i32
  }
  func.func @transform_5(%arg0: i32) -> (i32, i32) {
    %c0_i32 = arith.constant 0 : i32
    %c0_i32_0 = arith.constant 0 : i32
    return %c0_i32, %arg0 : i32, i32
  }
}

</mosaic_0001>

<llo_original>
// kernel: tpu_custom_call.1
$region0: #{tpu_custom_call.1}
  #allocation0 [shape = 'u32[]', space=smem, size = 0x4, offset = 0x4, fixed_abs, tag = 'smem constant byte address 0x4 - core index']
  #allocation1 [shape = 'u32[144,128]{1,0:T(1,128)}', space=vmem, size = 0x12000, scoped, tag = 'internal scratch']
  %s0 = inlined_call_operand.vmem [shape: f32[8,200], index: 0, kind: input, shape index: {}]
  %s1 = inlined_call_operand.vmem [shape: f32[32,8], index: 1, kind: input, shape index: {}]
  %s2 = inlined_call_operand.vmem [shape: f32[32,1], index: 2, kind: input, shape index: {}]
  %s3 = inlined_call_operand.vmem [shape: f32[4,32], index: 3, kind: input, shape index: {}]
  %s4 = inlined_call_operand.vmem [shape: f32[4,1], index: 4, kind: input, shape index: {}]
  %s5 = inlined_call_operand.hbm [shape: f32[4,200], index: 5, kind: output, shape index: {}]
  %s6 = sld [smem:[#allocation0]]
  $region30: #{tpu_custom_call.1} parent=0
    _
  %s8 = ssub.s32 1, %s6
  %s9 = scalar_select 0, %s8, %s6
  $region1: #{tpu_custom_call.1} parent=0
    #allocation2 [shape = 'u8[4096]{0}', space=vmem, size = 0x1000, scoped, tag = 'output window, operand 0, single buffered']
    #allocation3 [shape = 's32[1]{0}', space=sflag, size = 0x4, scoped, tag = 'scoped memory for tpu_custom_call.1']
    %10 = vsyncpa [#allocation3], 0
    // Predicated region
    $region2: #{tpu_custom_call.1} parent=1 // pred_check
      _
    $region3: #{tpu_custom_call.1} parent=1 // pred_check_branch
      %12 = sbr.rel (0) target = $region5
    $region4: #{tpu_custom_call.1} parent=1 // pred_region
      _
    $region5: #{tpu_custom_call.1} parent=1 // pred_fallthru
      _
    // Predicated region
    $region6: #{tpu_custom_call.1} parent=1 // pred_check
      _
    $region7: #{tpu_custom_call.1} parent=1 // pred_check_branch
      %14 = sbr.rel (0) target = $region9
    $region8: #{tpu_custom_call.1} parent=1 // pred_region
      _
    $region9: #{tpu_custom_call.1} parent=1 // pred_fallthru
      _
    // Predicated region
    $region10: #{tpu_custom_call.1} parent=1 // pred_check
      _
    $region11: #{tpu_custom_call.1} parent=1 // pred_check_branch
      %16 = sbr.rel (0) target = $region13
    $region12: #{tpu_custom_call.1} parent=1 // pred_region
      _
    $region13: #{tpu_custom_call.1} parent=1 // pred_fallthru
      _
    // Predicated region
    $region14: #{tpu_custom_call.1} parent=1 // pred_check
      _
    $region15: #{tpu_custom_call.1} parent=1 // pred_check_branch
      %18 = sbr.rel (0) target = $region17
    $region16: #{tpu_custom_call.1} parent=1 // pred_region
      _
    $region17: #{tpu_custom_call.1} parent=1 // pred_fallthru
      _
    // Predicated region
    $region18: #{tpu_custom_call.1} parent=1 // pred_check
      _
    $region19: #{tpu_custom_call.1} parent=1 // pred_check_branch
      %20 = sbr.rel (0) target = $region21
    $region20: #{tpu_custom_call.1} parent=1 // pred_region
      _
    $region21: #{tpu_custom_call.1} parent=1 // pred_fallthru
      _
    %v21 = vld [vmem:[%s0] sm:$0xff]
    %v22 = vld [vmem:[%s0 + $0x8] sm:$0xff]
    %v23 = vld [vmem:[%s1] sm:$0xff]
    %v24 = vld [vmem:[%s1 + $0x8] sm:$0xff]
    %v25 = vld [vmem:[%s1 + $0x10] sm:$0xff]
    %v26 = vld [vmem:[%s1 + $0x18] sm:$0xff]
    %v27 = vld [vmem:[%s2] sm:$0xff]
    %v28 = vld [vmem:[%s2 + $0x8] sm:$0xff]
    %v29 = vld [vmem:[%s2 + $0x10] sm:$0xff]
    %v30 = vld [vmem:[%s2 + $0x18] sm:$0xff]
    %32 = vset.pattern.permute.xlu0 0
    %33 = vperm.xlu0 %32, %v27
    %v34 = vpop.permute.xlu0 %33
    %37 = vset.pattern.permute.xlu0 0
    %38 = vperm.xlu0 %37, %v28
    %v39 = vpop.permute.xlu0 %38
    %42 = vset.pattern.permute.xlu0 0
    %43 = vperm.xlu0 %42, %v29
    %v44 = vpop.permute.xlu0 %43
    %47 = vset.pattern.permute.xlu0 0
    %48 = vperm.xlu0 %47, %v30
    %v49 = vpop.permute.xlu0 %48
    %vm51 = vcmask 64512
    %v53 = vsel %vm51, %v23, 0
    %v56 = vsel %vm51, %v24, 0
    %v59 = vsel %vm51, %v25, 0
    %v62 = vsel %vm51, %v26, 0
    %64 = vmatprep.subr.mxu0 %v22
    %65 = vmatpush1.msra.mxu0 %v21
    %66 = vmatprep.subr.mxu0 0.0
    %67 = vmatpush1.msra.mxu0 0.0
    %68 = vmatprep.subr.mxu0 0.0
    %69 = vmatpush1.msra.mxu0 0.0
    %70 = vmatprep.subr.mxu0 0.0
    %71 = vmatpush1.msra.mxu0 0.0
    %72 = vmatprep.subr.mxu0 0.0
    %73 = vmatpush1.msra.mxu0 0.0
    %74 = vmatprep.subr.mxu0 0.0
    %75 = vmatpush1.msra.mxu0 0.0
    %76 = vmatprep.subr.mxu0 0.0
    %77 = vmatpush1.msra.mxu0 0.0
    %78 = vmatprep.subr.mxu0 0.0
    %79 = vmatpush1.msra.mxu0 0.0
    %80 = vmatprep.subr.mxu0 0.0
    %81 = vmatpush1.msra.mxu0 0.0
    %82 = vmatprep.subr.mxu0 0.0
    %83 = vmatpush1.msra.mxu0 0.0
    %84 = vmatprep.subr.mxu0 0.0
    %85 = vmatpush1.msra.mxu0 0.0
    %86 = vmatprep.subr.mxu0 0.0
    %87 = vmatpush1.msra.mxu0 0.0
    %88 = vmatprep.subr.mxu0 0.0
    %89 = vmatpush1.msra.mxu0 0.0
    %90 = vmatprep.subr.mxu0 0.0
    %91 = vmatpush1.msra.mxu0 0.0
    %92 = vmatprep.subr.mxu0 0.0
    %93 = vmatpush1.msra.mxu0 0.0
    %94 = vmatprep.subr.mxu0 0.0
    %95 = vmatpush1.msra.mxu0 0.0
    %96 = vmatprep.subr.mxu0 0.0
    %97 = vmatpush1.msra.mxu0 0.0
    %98 = vmatprep.subr.mxu0 0.0
    %99 = vmatpush1.msra.mxu0 0.0
    %100 = vmatprep.subr.mxu0 0.0
    %101 = vmatpush1.msra.mxu0 0.0
    %102 = vmatprep.subr.mxu0 0.0
    %103 = vmatpush1.msra.mxu0 0.0
    %104 = vmatprep.subr.mxu0 0.0
    %105 = vmatpush1.msra.mxu0 0.0
    %106 = vmatprep.subr.mxu0 0.0
    %107 = vmatpush1.msra.mxu0 0.0
    %108 = vmatprep.subr.mxu0 0.0
    %109 = vmatpush1.msra.mxu0 0.0
    %110 = vmatprep.subr.mxu0 0.0
    %111 = vmatpush1.msra.mxu0 0.0
    %112 = vmatprep.subr.mxu0 0.0
    %113 = vmatpush1.msra.mxu0 0.0
    %114 = vmatprep.subr.mxu0 0.0
    %115 = vmatpush1.msra.mxu0 0.0
    %116 = vmatprep.subr.mxu0 0.0
    %117 = vmatpush1.msra.mxu0 0.0
    %118 = vmatprep.subr.mxu0 0.0
    %119 = vmatpush1.msra.mxu0 0.0
    %120 = vmatprep.subr.mxu0 0.0
    %121 = vmatpush1.msra.mxu0 0.0
    %122 = vmatprep.subr.mxu0 0.0
    %123 = vmatpush1.msra.mxu0 0.0
    %124 = vmatprep.subr.mxu0 0.0
    %125 = vmatpush1.msra.mxu0 0.0
    %126 = vmatprep.subr.mxu0 0.0
    %127 = vmatpush1.msra.mxu0 0.0
    %128 = vmatprep.mubr.f32.mxu0 0.0
    %129 = vmatmul.mubr.f32.gmra.mrb[0].mxu0 %v53
    %v130 = vpop.f32.mrb[0].mxu0
    %v131 = vadd.f32 %v34, %v130
    %v132 = vpop.f32.mrb[0].mxu0
    %v133 = vadd.f32 %v34, %v132
    %134 = vmatprep.mubr.f32.mxu0 0.0
    %135 = vmatmul.mubr.f32.gmra.mrb[0].mxu0 %v56
    %v136 = vpop.f32.mrb[0].mxu0
    %v137 = vadd.f32 %v39, %v136
    %v138 = vpop.f32.mrb[0].mxu0
    %v139 = vadd.f32 %v39, %v138
    %140 = vmatprep.mubr.f32.mxu0 0.0
    %141 = vmatmul.mubr.f32.gmra.mrb[0].mxu0 %v59
    %v142 = vpop.f32.mrb[0].mxu0
    %v143 = vadd.f32 %v44, %v142
    %v144 = vpop.f32.mrb[0].mxu0
    %v145 = vadd.f32 %v44, %v144
    %146 = vmatprep.mubr.f32.mxu0 0.0
    %147 = vmatmul.mubr.f32.gmra.mrb[0].mxu0 %v62
    %v148 = vpop.f32.mrb[0].mxu0
    %v149 = vadd.f32 %v49, %v148
    %v150 = vpop.f32.mrb[0].mxu0
    %v151 = vadd.f32 %v49, %v150
    %152 = vdwg.mxu0
    %v153 = vmax.f32 %v131, 0.0
    %v154 = vmax.f32 %v133, 0.0
    %v155 = vmax.f32 %v137, 0.0
    %v156 = vmax.f32 %v139, 0.0
    %v157 = vmax.f32 %v143, 0.0
    %v158 = vmax.f32 %v145, 0.0
    %v159 = vmax.f32 %v149, 0.0
    %v160 = vmax.f32 %v151, 0.0
    %v161 = vld [vmem:[%s3] sm:$0xf]
    %v162 = vld [vmem:[%s4] sm:$0xf]
    %164 = vset.pattern.permute.xlu0 0
    %165 = vperm.xlu0 %164, %v162
    %v166 = vpop.permute.xlu0 %165
    %vm168 = vcmask 261120
    %v170 = vsel %vm168, %v161, 0
    %172 = vmatprep.subr.mxu0 %v154
    %173 = vmatpush1.msra.mxu0 %v153
    %174 = vmatprep.subr.mxu0 %v156
    %175 = vmatpush1.msra.mxu0 %v155
    %176 = vmatprep.subr.mxu0 %v158
    %177 = vmatpush1.msra.mxu0 %v157
    %178 = vmatprep.subr.mxu0 %v160
    %179 = vmatpush1.msra.mxu0 %v159
    %180 = vmatprep.subr.mxu0 0.0
    %181 = vmatpush1.msra.mxu0 0.0
    %182 = vmatprep.subr.mxu0 0.0
    %183 = vmatpush1.msra.mxu0 0.0
    %184 = vmatprep.subr.mxu0 0.0
    %185 = vmatpush1.msra.mxu0 0.0
    %186 = vmatprep.subr.mxu0 0.0
    %187 = vmatpush1.msra.mxu0 0.0
    %188 = vmatprep.subr.mxu0 0.0
    %189 = vmatpush1.msra.mxu0 0.0
    %190 = vmatprep.subr.mxu0 0.0
    %191 = vmatpush1.msra.mxu0 0.0
    %192 = vmatprep.subr.mxu0 0.0
    %193 = vmatpush1.msra.mxu0 0.0
    %194 = vmatprep.subr.mxu0 0.0
    %195 = vmatpush1.msra.mxu0 0.0
    %196 = vmatprep.subr.mxu0 0.0
    %197 = vmatpush1.msra.mxu0 0.0
    %198 = vmatprep.subr.mxu0 0.0
    %199 = vmatpush1.msra.mxu0 0.0
    %200 = vmatprep.subr.mxu0 0.0
    %201 = vmatpush1.msra.mxu0 0.0
    %202 = vmatprep.subr.mxu0 0.0
    %203 = vmatpush1.msra.mxu0 0.0
    %204 = vmatprep.subr.mxu0 0.0
    %205 = vmatpush1.msra.mxu0 0.0
    %206 = vmatprep.subr.mxu0 0.0
    %207 = vmatpush1.msra.mxu0 0.0
    %208 = vmatprep.subr.mxu0 0.0
    %209 = vmatpush1.msra.mxu0 0.0
    %210 = vmatprep.subr.mxu0 0.0
    %211 = vmatpush1.msra.mxu0 0.0
    %212 = vmatprep.subr.mxu0 0.0
    %213 = vmatpush1.msra.mxu0 0.0
    %214 = vmatprep.subr.mxu0 0.0
    %215 = vmatpush1.msra.mxu0 0.0
    %216 = vmatprep.subr.mxu0 0.0
    %217 = vmatpush1.msra.mxu0 0.0
    %218 = vmatprep.subr.mxu0 0.0
    %219 = vmatpush1.msra.mxu0 0.0
    %220 = vmatprep.subr.mxu0 0.0
    %221 = vmatpush1.msra.mxu0 0.0
    %222 = vmatprep.subr.mxu0 0.0
    %223 = vmatpush1.msra.mxu0 0.0
    %224 = vmatprep.subr.mxu0 0.0
    %225 = vmatpush1.msra.mxu0 0.0
    %226 = vmatprep.subr.mxu0 0.0
    %227 = vmatpush1.msra.mxu0 0.0
    %228 = vmatprep.subr.mxu0 0.0
    %229 = vmatpush1.msra.mxu0 0.0
    %230 = vmatprep.subr.mxu0 0.0
    %231 = vmatpush1.msra.mxu0 0.0
    %232 = vmatprep.subr.mxu0 0.0
    %233 = vmatpush1.msra.mxu0 0.0
    %234 = vmatprep.subr.mxu0 0.0
    %235 = vmatpush1.msra.mxu0 0.0
    %236 = vmatprep.mubr.f32.mxu0 0.0
    %237 = vmatmul.mubr.f32.gmra.mrb[0].mxu0 %v170
    %v238 = vpop.f32.mrb[0].mxu0
    %v239 = vadd.f32 %v166, %v238
    %v240 = vpop.f32.mrb[0].mxu0
    %v241 = vadd.f32 %v166, %v240
    %242 = vdwg.mxu0
    %vm243 = vcmask 1043456
    %v244 = vsel %vm243, %v239, -inf
    %v245 = vrot.slane %v244, 4
    %v246 = vmax.f32 %v244, %v245
    %v247 = vrot.slane %v246, 2
    %v248 = vmax.f32 %v246, %v247
    %v249 = vrot.slane %v248, 1
    %v250 = vmax.f32 %v248, %v249
    %vm251 = vcmask 584704
    %v252 = vsel %vm251, %v241, -inf
    %v253 = vrot.slane %v252, 4
    %v254 = vmax.f32 %v252, %v253
    %v255 = vrot.slane %v254, 2
    %v256 = vmax.f32 %v254, %v255
    %v257 = vrot.slane %v256, 1
    %v258 = vmax.f32 %v256, %v257
    %v259 = vsub.f32 %v239, %v250
    %v260 = vsub.f32 %v241, %v258
    %v261 = vmul.f32 %v259, 1.442695
    %v262 = vpow.pop %v261
    %v263 = vmul.f32 %v260, 1.442695
    %v264 = vpow.pop %v263
    %v265 = vsel %vm243, %v262, 0.0
    %v266 = vrot.slane %v265, 4
    %v267 = vadd.f32 %v265, %v266
    %v268 = vrot.slane %v267, 2
    %v269 = vadd.f32 %v267, %v268
    %v270 = vrot.slane %v269, 1
    %v271 = vadd.f32 %v269, %v270
    %v272 = vsel %vm251, %v264, 0.0
    %v273 = vrot.slane %v272, 4
    %v274 = vadd.f32 %v272, %v273
    %v275 = vrot.slane %v274, 2
    %v276 = vadd.f32 %v274, %v275
    %v277 = vrot.slane %v276, 1
    %v278 = vadd.f32 %v276, %v277
    %v279 = vrcp.pop %v271
    %v280 = vrcp.pop %v278
    %v281 = vmul.f32 %v271, %v279
    %v282 = vmul.f32 %v278, %v280
    %v283 = vsub.f32 2.0, %v281
    %v284 = vsub.f32 2.0, %v282
    %v285 = vmul.f32 %v279, %v283
    %v286 = vmul.f32 %v280, %v284
    %v287 = vmul.f32 %v262, %v285
    %v288 = vmul.f32 %v264, %v286
    %v291 = vcombine.low %v287, %v288
    %vm293 = vcmask 588804
    %vm294 = vmor %vm293, %vm243
    %295 = vst.msk [vmem:[#allocation2] sm:$0xff] %vm294, %v291
    // Predicated region
    $region22: #{tpu_custom_call.1} parent=1 // pred_check
      _
    $region23: #{tpu_custom_call.1} parent=1 // pred_check_branch
      %297 = sbr.rel (0) target = $region25
    $region24: #{tpu_custom_call.1} parent=1 // pred_region
      %s299 = ssub.s32 128, 128
      %300 = vsyncadd [#allocation3], %s299
      %s302 = sshll.u32 [#allocation2], 4
      %s303 = int_to_ptr.vmem [resolvable:$true] %s302
      %305 = dma.vmem_to_hbm [thread:$0]  %s303, 128, %s5, [#allocation3]
    $region25: #{tpu_custom_call.1} parent=1 // pred_fallthru
      _
    // Predicated region
    $region26: #{tpu_custom_call.1} parent=1 // pred_check
      _
    $region27: #{tpu_custom_call.1} parent=1 // pred_check_branch
      %307 = sbr.rel (0) target = $region29
    $region28: #{tpu_custom_call.1} parent=1 // pred_region
      %308 = dma.done [#allocation3], 128
    $region29: #{tpu_custom_call.1} parent=1 // pred_fallthru
      _
    %309 = vsyncpa [#allocation3], 1

</llo_original>
